<compile_context>
chip_gen: v6e
topology: v6e:2x2x1
jax: 0.10.0
libtpu: 0.0.40
codegen_flags: <defaults>
</compile_context>

<pallas_src>
import functools

import jax
import jax.numpy as jnp
from jax.experimental import pallas as pl
from jax.experimental.pallas import tpu as pltpu


def _att_block_kernel(x_ref, w_ref, b_ref, out_ref, natt_ref, cla_ref, *,
                      c_out, t_valid, activation):
    # x_ref:    (b_blk, C_in, T_pad)
    # w_ref:    (2*C_out, C_in)   stacked [w_att; w_cla]
    # b_ref:    (2*C_out, 1)      stacked [b_att; b_cla]
    # out_ref:  (1, b_blk, C_out) pooled output
    # natt_ref: (b_blk, C_out, T_pad)
    # cla_ref:  (b_blk, C_out, T_pad)
    x = x_ref[...]
    w = w_ref[...]
    bias = b_ref[...]

    b_blk = x.shape[0]
    t_pad = x.shape[-1]

    # Single fused batched matmul for BOTH 1x1 convs (MXU, f32 accumulate).
    w_b = jnp.broadcast_to(w, (b_blk,) + w.shape)                 # (b_blk, 2C, C_in)
    y = jnp.einsum("boc,bct->bot", w_b, x,
                   preferred_element_type=jnp.float32)            # (b_blk, 2C, T_pad)
    y = y + bias[None, :, :].astype(jnp.float32)

    att = y[:, :c_out, :]                                         # (b_blk, C_out, T_pad)
    cla = y[:, c_out:, :]

    # clamp(-10, 10) then mask padded time steps so they get zero attention.
    att = jnp.clip(att, -10.0, 10.0)
    if t_valid < t_pad:
        t_idx = jax.lax.broadcasted_iota(jnp.int32, (1, 1, t_pad), 2)
        att = jnp.where(t_idx < t_valid, att, -1e30)

    # Softmax over time (lane axis). exp(-1e30 - m) underflows to exactly 0.
    m = jnp.max(att, axis=-1, keepdims=True)
    e = jnp.exp(att - m)
    s = jnp.sum(e, axis=-1, keepdims=True)
    inv = pl.reciprocal(s, approx=True)        # EUP vrcp (free slot)
    inv = inv * (2.0 - s * inv)                # one Newton step on a tiny tile
    norm_att = e * inv                         # exactly 0 at padded t

    if activation == "sigmoid":
        cla = jax.nn.sigmoid(cla)
    # activation == 'linear': identity

    pooled = jnp.sum(norm_att * cla, axis=-1)  # (b_blk, C_out); exact (pads are 0)

    out_ref[0] = pooled.astype(out_ref.dtype)
    natt_ref[...] = norm_att.astype(natt_ref.dtype)
    cla_ref[...] = cla.astype(cla_ref.dtype)


def att_block_forward(x, w_att, b_att, w_cla, b_cla, *, activation="linear",
                      b_blk=None, matmul_dtype=None):
    """x: (B, C_in, T). weights: (C_out, C_in) (size-1 conv dim squeezed), biases: (C_out,).

    Returns (out (B, C_out), norm_att (B, C_out, T), cla (B, C_out, T)), all f32.
    matmul_dtype: optionally jnp.bfloat16 on v6e/v7x (accumulation stays f32).
    """
    if activation not in ("linear", "sigmoid"):
        raise ValueError(f"unsupported activation: {activation}")

    B, C_in, T = x.shape
    C_out = w_att.shape[0]

    # ---- batch blocking: amortize per-step overhead, keep >=2 grid steps ----
    if b_blk is None:
        b_blk = min(B, 8)
        if B > 1 and pl.cdiv(B, b_blk) < 2:
            b_blk = pl.cdiv(B, 2)       # v7x megacore: give both TCs a step
    nb = pl.cdiv(B, b_blk)
    B_pad = nb * b_blk

    # ---- lane-dense time axis (multiple of 128) ----
    T_pad = 128 * pl.cdiv(T, 128)

    compute_dtype = x.dtype if matmul_dtype is None else matmul_dtype

    x_p = x
    if B_pad != B or T_pad != T:
        x_p = jnp.pad(x, ((0, B_pad - B), (0, 0), (0, T_pad - T)))
    x_p = x_p.astype(compute_dtype)

    # ---- stack the two 1x1 convs into one weight / bias ----
    w = jnp.concatenate([w_att, w_cla], axis=0).astype(compute_dtype)       # (2C, C_in)
    b = jnp.concatenate([b_att, b_cla], axis=0).astype(jnp.float32)
    b = b.reshape(2 * C_out, 1)

    kernel = functools.partial(_att_block_kernel, c_out=C_out, t_valid=T,
                               activation=activation)

    # ---- VMEM budget hint (sized from the per-step footprint) ----
    in_bytes = jnp.dtype(compute_dtype).itemsize
    per_step = (2 * b_blk * C_in * T_pad * in_bytes          # x tile, double-buffered
                + 2 * 2 * b_blk * C_out * T_pad * 4          # natt/cla tiles, double-buffered
                + 2 * C_out * C_in * in_bytes + 2 * C_out * 4  # weights + bias (resident)
                + 2 * b_blk * C_out * 4)                     # pooled tile
    vmem_limit = int(min(max(4 * per_step, 16 * 2**20), 64 * 2**20))

    grid_spec = pltpu.PrefetchScalarGridSpec(
        num_scalar_prefetch=0,
        grid=(nb,),
        in_specs=[
            pl.BlockSpec((b_blk, C_in, T_pad), lambda i: (i, 0, 0)),  # x tile
            pl.BlockSpec((2 * C_out, C_in), lambda i: (0, 0)),        # stacked weight (resident)
            pl.BlockSpec((2 * C_out, 1), lambda i: (0, 0)),           # stacked bias
        ],
        out_specs=[
            pl.BlockSpec((1, b_blk, C_out), lambda i: (i, 0, 0)),       # pooled
            pl.BlockSpec((b_blk, C_out, T_pad), lambda i: (i, 0, 0)),   # norm_att (lane-dense)
            pl.BlockSpec((b_blk, C_out, T_pad), lambda i: (i, 0, 0)),   # cla (lane-dense)
        ],
    )

    out_shapes = (
        jax.ShapeDtypeStruct((nb, b_blk, C_out), jnp.float32),
        jax.ShapeDtypeStruct((B_pad, C_out, T_pad), jnp.float32),
        jax.ShapeDtypeStruct((B_pad, C_out, T_pad), jnp.float32),
    )

    pooled3, natt_p, cla_p = pl.pallas_call(
        kernel,
        out_shape=out_shapes,
        grid_spec=grid_spec,
        compiler_params=pltpu.CompilerParams(
            dimension_semantics=("parallel",),
            vmem_limit_bytes=vmem_limit),
    )(x_p, w, b)

    # Strip batch/time padding (layout plumbing only).
    out = pooled3.reshape(B_pad, C_out)[:B]
    norm_att = natt_p[:B, :, :T]
    cla = cla_p[:B, :, :T]
    return out, norm_att, cla


def _xavier_uniform(key, shape):
    # matches torch.nn.init.xavier_uniform_ for Conv1d(out, in, 1) weights
    fan_out, fan_in = shape
    limit = (6.0 / (fan_in + fan_out)) ** 0.5
    return jax.random.uniform(key, shape, jnp.float32, -limit, limit)


def _reference(x, w_att, b_att, w_cla, b_cla, activation):
    att = jnp.einsum("oi,bit->bot", w_att, x) + b_att[None, :, None]
    norm_att = jax.nn.softmax(jnp.clip(att, -10.0, 10.0), axis=-1)
    cla = jnp.einsum("oi,bit->bot", w_cla, x) + b_cla[None, :, None]
    if activation == "sigmoid":
        cla = jax.nn.sigmoid(cla)
    out = jnp.sum(norm_att * cla, axis=2)
    return out, norm_att, cla


if __name__ == "__main__":
    B, C_in, C_out, T = 4, 32, 8, 16

    key = jax.random.PRNGKey(0)
    k_x, k_wa, k_wc, k_ba, k_bc = jax.random.split(key, 5)

    x = jax.random.normal(k_x, (B, C_in, T), jnp.float32)
    w_att = _xavier_uniform(k_wa, (C_out, C_in))     # conv kernel dim (=1) squeezed
    w_cla = _xavier_uniform(k_wc, (C_out, C_in))
    # init_layer zeroes biases; use small nonzero biases here to exercise the bias path.
    b_att = 0.1 * jax.random.normal(k_ba, (C_out,), jnp.float32)
    b_cla = 0.1 * jax.random.normal(k_bc, (C_out,), jnp.float32)

    for activation in ("sigmoid", "linear"):
        out, norm_att, cla = att_block_forward(
            x, w_att, b_att, w_cla, b_cla, activation=activation)
        jax.block_until_ready((out, norm_att, cla))

        ref_out, ref_natt, ref_cla = _reference(x, w_att, b_att, w_cla, b_cla, activation)
        assert out.shape == (B, C_out)
        assert norm_att.shape == (B, C_out, T)
        assert cla.shape == (B, C_out, T)
        assert jnp.allclose(out, ref_out, atol=1e-4, rtol=1e-4)
        assert jnp.allclose(norm_att, ref_natt, atol=1e-4, rtol=1e-4)
        assert jnp.allclose(cla, ref_cla, atol=1e-4, rtol=1e-4)

    print("KERNEL_OK")
</pallas_src>

<mosaic_0001>
module attributes {stable_mosaic.version = 11 : i64} {
  func.func @_att_block_kernel(%arg0: i32, %arg1: memref<2x32x128xf32, #tpu.memory_space<vmem>>, %arg2: memref<16x32xf32, #tpu.memory_space<vmem>>, %arg3: memref<16x1xf32, #tpu.memory_space<vmem>>, %arg4: memref<1x2x8xf32, #tpu.memory_space<vmem>>, %arg5: memref<2x8x128xf32, #tpu.memory_space<vmem>>, %arg6: memref<2x8x128xf32, #tpu.memory_space<vmem>>) attributes {dimension_semantics = [#tpu.dimension_semantics<parallel>], iteration_bounds = array<i64: 2>, scalar_prefetch = 0 : i64, scratch_operands = 0 : i64, tpu.core_type = #tpu.core_type<tc>, window_params = [{transform_indices = @transform_0, window_bounds = array<i64: 2, 32, 128>}, {pipeline_mode = #tpu.pipeline_mode<synchronous>, transform_indices = @transform_1, window_bounds = array<i64: 16, 32>}, {pipeline_mode = #tpu.pipeline_mode<synchronous>, transform_indices = @transform_2, window_bounds = array<i64: 16, 1>}, {transform_indices = @transform_3, window_bounds = array<i64: 1, 2, 8>}, {transform_indices = @transform_4, window_bounds = array<i64: 2, 8, 128>}, {transform_indices = @transform_5, window_bounds = array<i64: 2, 8, 128>}]} {
    %c0 = arith.constant 0 : index
    %c0_0 = arith.constant 0 : index
    %c0_1 = arith.constant 0 : index
    %0 = vector.load %arg1[%c0, %c0_0, %c0_1] : memref<2x32x128xf32, #tpu.memory_space<vmem>>, vector<2x32x128xf32>
    %c0_2 = arith.constant 0 : index
    %c0_3 = arith.constant 0 : index
    %1 = vector.load %arg2[%c0_2, %c0_3] : memref<16x32xf32, #tpu.memory_space<vmem>>, vector<16x32xf32>
    %c0_4 = arith.constant 0 : index
    %c0_5 = arith.constant 0 : index
    %2 = vector.load %arg3[%c0_4, %c0_5] : memref<16x1xf32, #tpu.memory_space<vmem>>, vector<16x1xf32>
    %3 = vector.shape_cast %1 : vector<16x32xf32> to vector<1x16x32xf32>
    %4 = vector.broadcast %3 : vector<1x16x32xf32> to vector<2x16x32xf32>
    "tpu.trace_start"() <{level = 10 : i32, message = "boc,bct->bot"}> : () -> ()
    %cst = arith.constant dense<0.000000e+00> : vector<2x16x128xf32>
    %5 = tpu.matmul %4, %0, %cst {dimension_numbers = #tpu.dot_dimension_numbers<[2], [1], [1], [2], [0, 0, 0, 1, 1, 2], [0], [0]>} : vector<2x16x32xf32>, vector<2x32x128xf32>, vector<2x16x128xf32> -> vector<2x16x128xf32>
    "tpu.trace_stop"() : () -> ()
    %6 = vector.shape_cast %2 : vector<16x1xf32> to vector<1x16x1xf32>
    %7 = vector.broadcast %6 : vector<1x16x1xf32> to vector<2x16x128xf32>
    %8 = arith.addf %5, %7 : vector<2x16x128xf32>
    %9 = vector.extract_strided_slice %8 {offsets = [0, 0, 0], sizes = [2, 8, 128], strides = [1, 1, 1]} : vector<2x16x128xf32> to vector<2x8x128xf32>
    %10 = vector.extract_strided_slice %8 {offsets = [0, 8, 0], sizes = [2, 8, 128], strides = [1, 1, 1]} : vector<2x16x128xf32> to vector<2x8x128xf32>
    %cst_6 = arith.constant -1.000000e+01 : f32
    %cst_7 = arith.constant 1.000000e+01 : f32
    %11 = vector.broadcast %cst_6 : f32 to vector<2x8x128xf32>
    %12 = arith.maximumf %11, %9 : vector<2x8x128xf32>
    %13 = vector.broadcast %cst_7 : f32 to vector<2x8x128xf32>
    %14 = arith.minimumf %13, %12 : vector<2x8x128xf32>
    %15 = tpu.iota {dimensions = array<i32: 2>} : vector<1x1x128xi32>
    %c16_i32 = arith.constant 16 : i32
    %16 = vector.broadcast %c16_i32 : i32 to vector<1x1x128xi32>
    %17 = arith.cmpi slt, %15, %16 : vector<1x1x128xi32>
    %cst_8 = arith.constant -1.000000e+30 : f32
    %18 = vector.shape_cast %17 : vector<1x1x128xi1> to vector<1x1x128xi1>
    %19 = vector.broadcast %18 : vector<1x1x128xi1> to vector<2x8x128xi1>
    %20 = vector.broadcast %cst_8 : f32 to vector<2x8x128xf32>
    %21 = arith.select %19, %14, %20 : vector<2x8x128xi1>, vector<2x8x128xf32>
    %cst_9 = arith.constant dense<0xFF800000> : vector<2x8xf32>
    %22 = vector.multi_reduction <maximumf>, %21, %cst_9 [2] : vector<2x8x128xf32> to vector<2x8xf32>
    %23 = vector.shape_cast %22 : vector<2x8xf32> to vector<2x8x1xf32>
    %24 = vector.broadcast %23 : vector<2x8x1xf32> to vector<2x8x128xf32>
    %25 = arith.subf %21, %24 : vector<2x8x128xf32>
    %26 = math.exp %25 : vector<2x8x128xf32>
    %cst_10 = arith.constant dense<0.000000e+00> : vector<2x8xf32>
    %27 = vector.multi_reduction <add>, %26, %cst_10 [2] : vector<2x8x128xf32> to vector<2x8xf32>
    %28 = vector.shape_cast %27 : vector<2x8xf32> to vector<2x8x1xf32>
    %29 = tpu.reciprocal %28 {approx = true} : vector<2x8x1xf32> -> vector<2x8x1xf32>
    %30 = arith.mulf %28, %29 : vector<2x8x1xf32>
    %cst_11 = arith.constant 2.000000e+00 : f32
    %31 = vector.broadcast %cst_11 : f32 to vector<2x8x1xf32>
    %32 = arith.subf %31, %30 : vector<2x8x1xf32>
    %33 = arith.mulf %29, %32 : vector<2x8x1xf32>
    %34 = vector.broadcast %33 : vector<2x8x1xf32> to vector<2x8x128xf32>
    %35 = arith.mulf %26, %34 : vector<2x8x128xf32>
    %36 = arith.negf %10 : vector<2x8x128xf32>
    %37 = math.exp %36 : vector<2x8x128xf32>
    %cst_12 = arith.constant 1.000000e+00 : f32
    %38 = vector.broadcast %cst_12 : f32 to vector<2x8x128xf32>
    %39 = arith.addf %38, %37 : vector<2x8x128xf32>
    %40 = arith.divf %38, %39 : vector<2x8x128xf32>
    %41 = arith.mulf %35, %40 : vector<2x8x128xf32>
    %cst_13 = arith.constant dense<0.000000e+00> : vector<2x8xf32>
    %42 = vector.multi_reduction <add>, %41, %cst_13 [2] : vector<2x8x128xf32> to vector<2x8xf32>
    %c0_14 = arith.constant 0 : index
    %c0_15 = arith.constant 0 : index
    %c0_16 = arith.constant 0 : index
    %43 = vector.load %arg4[%c0_14, %c0_15, %c0_16] : memref<1x2x8xf32, #tpu.memory_space<vmem>>, vector<1x2x8xf32>
    %44 = vector.shape_cast %43 : vector<1x2x8xf32> to vector<2x8xf32>
    %45 = vector.shape_cast %42 : vector<2x8xf32> to vector<1x2x8xf32>
    tpu.vector_store %arg4[%c0_14, %c0_15, %c0_16], %45 {strides = array<i32>} : memref<1x2x8xf32, #tpu.memory_space<vmem>>, vector<1x2x8xf32>,
    %c0_17 = arith.constant 0 : index
    %c0_18 = arith.constant 0 : index
    %c0_19 = arith.constant 0 : index
    %46 = vector.load %arg5[%c0_17, %c0_18, %c0_19] : memref<2x8x128xf32, #tpu.memory_space<vmem>>, vector<2x8x128xf32>
    tpu.vector_store %arg5[%c0_17, %c0_18, %c0_19], %35 {strides = array<i32>} : memref<2x8x128xf32, #tpu.memory_space<vmem>>, vector<2x8x128xf32>,
    %c0_20 = arith.constant 0 : index
    %c0_21 = arith.constant 0 : index
    %c0_22 = arith.constant 0 : index
    %47 = vector.load %arg6[%c0_20, %c0_21, %c0_22] : memref<2x8x128xf32, #tpu.memory_space<vmem>>, vector<2x8x128xf32>
    tpu.vector_store %arg6[%c0_20, %c0_21, %c0_22], %40 {strides = array<i32>} : memref<2x8x128xf32, #tpu.memory_space<vmem>>, vector<2x8x128xf32>,
    return
  }
  func.func @transform_0(%arg0: i32) -> (i32, i32, i32) {
    %c0_i32 = arith.constant 0 : i32
    %c0_i32_0 = arith.constant 0 : i32
    %c0_i32_1 = arith.constant 0 : i32
    return %arg0, %c0_i32, %c0_i32_0 : i32, i32, i32
  }
  func.func @transform_1(%arg0: i32) -> (i32, i32) {
    %c0_i32 = arith.constant 0 : i32
    %c0_i32_0 = arith.constant 0 : i32
    %c0_i32_1 = arith.constant 0 : i32
    return %c0_i32, %c0_i32_0 : i32, i32
  }
  func.func @transform_2(%arg0: i32) -> (i32, i32) {
    %c0_i32 = arith.constant 0 : i32
    %c0_i32_0 = arith.constant 0 : i32
    %c0_i32_1 = arith.constant 0 : i32
    return %c0_i32, %c0_i32_0 : i32, i32
  }
  func.func @transform_3(%arg0: i32) -> (i32, i32, i32) {
    %c0_i32 = arith.constant 0 : i32
    %c0_i32_0 = arith.constant 0 : i32
    %c0_i32_1 = arith.constant 0 : i32
    return %arg0, %c0_i32, %c0_i32_0 : i32, i32, i32
  }
  func.func @transform_4(%arg0: i32) -> (i32, i32, i32) {
    %c0_i32 = arith.constant 0 : i32
    %c0_i32_0 = arith.constant 0 : i32
    %c0_i32_1 = arith.constant 0 : i32
    return %arg0, %c0_i32, %c0_i32_0 : i32, i32, i32
  }
  func.func @transform_5(%arg0: i32) -> (i32, i32, i32) {
    %c0_i32 = arith.constant 0 : i32
    %c0_i32_0 = arith.constant 0 : i32
    %c0_i32_1 = arith.constant 0 : i32
    return %arg0, %c0_i32, %c0_i32_0 : i32, i32, i32
  }
}

</mosaic_0001>

<llo_original>
// kernel: tpu_custom_call.1
$region0: #{tpu_custom_call.1}
  #allocation0 [shape = 'u32[]', space=smem, size = 0x4, offset = 0x4, fixed_abs, tag = 'smem constant byte address 0x4 - core index']
  #allocation1 [shape = 'u32[144,128]{1,0:T(1,128)}', space=vmem, size = 0x12000, scoped, tag = 'internal scratch']
  %s0 = inlined_call_operand.hbm [shape: f32[4,32,128], index: 0, kind: input, shape index: {}]
  %s1 = inlined_call_operand.vmem [shape: f32[16,32], index: 1, kind: input, shape index: {}]
  %s2 = inlined_call_operand.vmem [shape: f32[16,1], index: 2, kind: input, shape index: {}]
  %s3 = inlined_call_operand.hbm [shape: f32[2,2,8], index: 3, kind: output, shape index: {0}]
  %s4 = inlined_call_operand.hbm [shape: f32[4,8,128], index: 4, kind: output, shape index: {1}]
  %s5 = inlined_call_operand.hbm [shape: f32[4,8,128], index: 5, kind: output, shape index: {2}]
  %6 = xla_tuple %s3, %s4, %s5
  %s7 = sld [smem:[#allocation0]]
  $region65: #{tpu_custom_call.1} parent=0
    _
  %s9 = ssub.s32 1, %s7
  %s10 = scalar_select 0, %s9, %s7
  $region1: #{tpu_custom_call.1} parent=0
    #allocation2 [shape = 'u8[65536]{0}', space=vmem, size = 0x10000, scoped, tag = 'input window, operand 0']
    #allocation3 [shape = 's32[2]{0}', space=sflag, size = 0x8, scoped, tag = 'scoped memory for tpu_custom_call.1']
    #allocation4 [shape = 's32[2]{0}', space=sflag, size = 0x8, scoped, tag = 'scoped memory for tpu_custom_call.1']
    #allocation5 [shape = 'u8[2048]{0}', space=vmem, size = 0x800, scoped, tag = 'output window, operand 0']
    #allocation6 [shape = 'u8[16384]{0}', space=vmem, size = 0x4000, scoped, tag = 'output window, operand 1']
    #allocation7 [shape = 's32[2]{0}', space=sflag, size = 0x8, scoped, tag = 'scoped memory for tpu_custom_call.1']
    #allocation8 [shape = 'u8[16384]{0}', space=vmem, size = 0x4000, scoped, tag = 'output window, operand 2']
    %11 = vsyncpa [#allocation3], 0
    %s12 = scalar_lea.sflag [#allocation3], 1
    %13 = vsyncpa %s12, 0
    %14 = vsyncpa [#allocation4], 0
    %s15 = scalar_lea.sflag [#allocation4], 1
    %16 = vsyncpa %s15, 0
    %17 = vsyncpa [#allocation7], 0
    %s18 = scalar_lea.sflag [#allocation7], 1
    %19 = vsyncpa %s18, 0
    loop: start=0, step=1, limit=4
    $region2: #{tpu_custom_call.1} parent=1 // loop_pre_header
      _
    $region3: #{tpu_custom_call.1} parent=1 // loop_header
      %s21 = sphi 0, %s25
      %p22 = scmp.ge.s32.totalorder %s21, 4
      %s31 = sphi 0, %s33
      %s34 = sphi 0, %s31
      %s35 = sphi 0, %s34
      %s51 = sphi 0, %s35
      %s55 = sphi 0, %s55
      %s57 = sphi 0, %s55
      %s58 = sphi 0, %s57
      %s72 = sphi 0, %s58
      %s76 = sphi 0, %s76
      %s78 = sphi 0, %s76
      %s79 = sphi 0, %s78
      %s93 = sphi 0, %s79
      %s99 = sphi 0, %s101
      %s102 = sphi 0, %s99
      %s103 = sphi 0, %s102
      %s119 = sphi 0, %s103
      %s125 = sphi 0, %s127
      %s128 = sphi 0, %s125
      %s129 = sphi 0, %s128
      %s145 = sphi 0, %s129
      %s151 = sphi 0, %s153
      %s154 = sphi 0, %s151
      %s155 = sphi 0, %s154
      %s171 = sphi 0, %s155
    $region4: #{tpu_custom_call.1} parent=1 // loop_header_branch
      %24 = sbr.rel (%p22) target = $region8
    $region5: #{tpu_custom_call.1} parent=1 // loop_body
      %s26 = ssub.s32 %s21, 1
      %s27 = ssub.s32 %s21, 2
      %s28 = sadd.s32 %s21, 1
      %s29 = ssub.s32 %s21, %s28
      %p30 = scmp.eq.s32.totalorder %s29, 0
      %s32 = sadd.s32 %s31, 1
      %s33 = scalar_select %p30, %s31, %s32
      %p36 = pneg %p30
      %p37 = scmp.eq.s32.totalorder %s21, 1
      %p38 = por %p36, %p37
      %p39 = scmp.ne.s32.totalorder %s31, %s34
      %p40 = scmp.eq.s32.totalorder %s21, 0
      %p41 = por %p39, %p40
      %p42 = scmp.ne.s32.totalorder %s31, %s34
      %p43 = scmp.eq.s32.totalorder %s26, 1
      %p44 = por %p42, %p43
      %p45 = scmp.ne.s32.totalorder %s34, %s35
      %p46 = scmp.eq.s32.totalorder %s26, 0
      %p47 = por %p45, %p46
      %p48 = scmp.ne.s32.totalorder %s34, %s35
      %p49 = scmp.eq.s32.totalorder %s27, 1
      %p50 = por %p48, %p49
      %p52 = scmp.ne.s32.totalorder %s35, %s51
      %p53 = scmp.eq.s32.totalorder %s27, 0
      %p54 = por %p52, %p53
      %s56 = sadd.s32 %s55, 1
      %p59 = scmp.eq.s32.totalorder %s21, 1
      %p60 = scmp.ne.s32.totalorder %s55, %s57
      %p61 = scmp.eq.s32.totalorder %s21, 0
      %p62 = por %p60, %p61
      %p63 = scmp.ne.s32.totalorder %s55, %s57
      %p64 = scmp.eq.s32.totalorder %s26, 1
      %p65 = por %p63, %p64
      %p66 = scmp.ne.s32.totalorder %s57, %s58
      %p67 = scmp.eq.s32.totalorder %s26, 0
      %p68 = por %p66, %p67
      %p69 = scmp.ne.s32.totalorder %s57, %s58
      %p70 = scmp.eq.s32.totalorder %s27, 1
      %p71 = por %p69, %p70
      %p73 = scmp.ne.s32.totalorder %s58, %s72
      %p74 = scmp.eq.s32.totalorder %s27, 0
      %p75 = por %p73, %p74
      %s77 = sadd.s32 %s76, 1
      %p80 = scmp.eq.s32.totalorder %s21, 1
      %p81 = scmp.ne.s32.totalorder %s76, %s78
      %p82 = scmp.eq.s32.totalorder %s21, 0
      %p83 = por %p81, %p82
      %p84 = scmp.ne.s32.totalorder %s76, %s78
      %p85 = scmp.eq.s32.totalorder %s26, 1
      %p86 = por %p84, %p85
      %p87 = scmp.ne.s32.totalorder %s78, %s79
      %p88 = scmp.eq.s32.totalorder %s26, 0
      %p89 = por %p87, %p88
      %p90 = scmp.ne.s32.totalorder %s78, %s79
      %p91 = scmp.eq.s32.totalorder %s27, 1
      %p92 = por %p90, %p91
      %p94 = scmp.ne.s32.totalorder %s79, %s93
      %p95 = scmp.eq.s32.totalorder %s27, 0
      %p96 = por %p94, %p95
      %s97 = ssub.s32 %s21, %s28
      %p98 = scmp.eq.s32.totalorder %s97, 0
      %s100 = sadd.s32 %s99, 1
      %s101 = scalar_select %p98, %s99, %s100
      %p104 = pneg %p98
      %p105 = scmp.eq.s32.totalorder %s21, 1
      %p106 = por %p104, %p105
      %p107 = scmp.ne.s32.totalorder %s99, %s102
      %p108 = scmp.eq.s32.totalorder %s21, 0
      %p109 = por %p107, %p108
      %p110 = scmp.ne.s32.totalorder %s99, %s102
      %p111 = scmp.eq.s32.totalorder %s26, 1
      %p112 = por %p110, %p111
      %p113 = scmp.ne.s32.totalorder %s102, %s103
      %p114 = scmp.eq.s32.totalorder %s26, 0
      %p115 = por %p113, %p114
      %p116 = scmp.ne.s32.totalorder %s102, %s103
      %p117 = scmp.eq.s32.totalorder %s27, 1
      %p118 = por %p116, %p117
      %p120 = scmp.ne.s32.totalorder %s103, %s119
      %p121 = scmp.eq.s32.totalorder %s27, 0
      %p122 = por %p120, %p121
      %s123 = ssub.s32 %s21, %s28
      %p124 = scmp.eq.s32.totalorder %s123, 0
      %s126 = sadd.s32 %s125, 1
      %s127 = scalar_select %p124, %s125, %s126
      %p130 = pneg %p124
      %p131 = scmp.eq.s32.totalorder %s21, 1
      %p132 = por %p130, %p131
      %p133 = scmp.ne.s32.totalorder %s125, %s128
      %p134 = scmp.eq.s32.totalorder %s21, 0
      %p135 = por %p133, %p134
      %p136 = scmp.ne.s32.totalorder %s125, %s128
      %p137 = scmp.eq.s32.totalorder %s26, 1
      %p138 = por %p136, %p137
      %p139 = scmp.ne.s32.totalorder %s128, %s129
      %p140 = scmp.eq.s32.totalorder %s26, 0
      %p141 = por %p139, %p140
      %p142 = scmp.ne.s32.totalorder %s128, %s129
      %p143 = scmp.eq.s32.totalorder %s27, 1
      %p144 = por %p142, %p143
      %p146 = scmp.ne.s32.totalorder %s129, %s145
      %p147 = scmp.eq.s32.totalorder %s27, 0
      %p148 = por %p146, %p147
      %s149 = ssub.s32 %s21, %s28
      %p150 = scmp.eq.s32.totalorder %s149, 0
      %s152 = sadd.s32 %s151, 1
      %s153 = scalar_select %p150, %s151, %s152
      %p156 = pneg %p150
      %p157 = scmp.eq.s32.totalorder %s21, 1
      %p158 = por %p156, %p157
      %p159 = scmp.ne.s32.totalorder %s151, %s154
      %p160 = scmp.eq.s32.totalorder %s21, 0
      %p161 = por %p159, %p160
      %p162 = scmp.ne.s32.totalorder %s151, %s154
      %p163 = scmp.eq.s32.totalorder %s26, 1
      %p164 = por %p162, %p163
      %p165 = scmp.ne.s32.totalorder %s154, %s155
      %p166 = scmp.eq.s32.totalorder %s26, 0
      %p167 = por %p165, %p166
      %p168 = scmp.ne.s32.totalorder %s154, %s155
      %p169 = scmp.eq.s32.totalorder %s27, 1
      %p170 = por %p168, %p169
      %p172 = scmp.ne.s32.totalorder %s155, %s171
      %p173 = scmp.eq.s32.totalorder %s27, 0
      %p174 = por %p172, %p173
      %p175 = scmp.le.s32.totalorder 1, %s21
      %p176 = scmp.lt.s32.totalorder %s21, 3
      %p177 = pnand %p175, %p176
      %p178 = pneg %p177
      // Predicated region
      $region9: #{tpu_custom_call.1} parent=5 // pred_check
        _
      $region10: #{tpu_custom_call.1} parent=5 // pred_check_branch
        %180 = sbr.rel (%p177) target = $region12
      $region11: #{tpu_custom_call.1} parent=5 // pred_region
        %s181 = ssub.s32 %s21, 1
        // Predicated region
        $region13: #{tpu_custom_call.1} parent=11 // pred_check
          %p182 = pneg %p68
        $region14: #{tpu_custom_call.1} parent=11 // pred_check_branch
          %184 = sbr.rel (%p182) target = $region16
        $region15: #{tpu_custom_call.1} parent=11 // pred_region
          _
        $region16: #{tpu_custom_call.1} parent=11 // pred_fallthru
          _
        // Predicated region
        $region17: #{tpu_custom_call.1} parent=11 // pred_check
          %p185 = pneg %p89
        $region18: #{tpu_custom_call.1} parent=11 // pred_check_branch
          %187 = sbr.rel (%p185) target = $region20
        $region19: #{tpu_custom_call.1} parent=11 // pred_region
          _
        $region20: #{tpu_custom_call.1} parent=11 // pred_fallthru
          _
      $region12: #{tpu_custom_call.1} parent=5 // pred_fallthru
        _
      %p188 = scmp.lt.s32.totalorder %s21, 2
      // Predicated region
      $region21: #{tpu_custom_call.1} parent=5 // pred_check
        %p189 = pneg %p188
      $region22: #{tpu_custom_call.1} parent=5 // pred_check_branch
        %191 = sbr.rel (%p189) target = $region24
      $region23: #{tpu_custom_call.1} parent=5 // pred_region
        // Predicated region
        $region25: #{tpu_custom_call.1} parent=23 // pred_check
          %p192 = pneg %p41
        $region26: #{tpu_custom_call.1} parent=23 // pred_check_branch
          %194 = sbr.rel (%p192) target = $region28
        $region27: #{tpu_custom_call.1} parent=23 // pred_region
          %s195 = sand.u32 %s31, 1
          %s196 = scalar_lea.sflag [#allocation3], %s195
          %s197 = sand.u32 %s31, 1
          %s198 = smul.addr %s197, 64
          %s199 = scalar_lea.vmem [#allocation2], %s198
          %s200 = smul.u32 2, %s21
          %s202 = ssub.s32 1024, 1024
          %203 = vsyncadd %s196, %s202
          %s204 = smul.addr %s200, 4
          %s205 = smul.addr %s204, 128
          %s206 = scalar_lea.hbm %s0, %s205
          %s207 = sshll.u32 %s199, 4
          %s208 = int_to_ptr.vmem [resolvable:$true] %s207
          %213 = dma.hbm_to_vmem [thread:$0]  %s206, 1024, %s208, %s196, 128, 128, 8
        $region28: #{tpu_custom_call.1} parent=23 // pred_fallthru
          _
      $region24: #{tpu_custom_call.1} parent=5 // pred_fallthru
        _
      %p214 = scmp.le.s32.totalorder 1, %s21
      %p215 = scmp.lt.s32.totalorder %s21, 3
      %p216 = pnand %p214, %p215
      %p217 = pneg %p216
      // Predicated region
      $region29: #{tpu_custom_call.1} parent=5 // pred_check
        _
      $region30: #{tpu_custom_call.1} parent=5 // pred_check_branch
        %219 = sbr.rel (%p216) target = $region32
      $region31: #{tpu_custom_call.1} parent=5 // pred_region
        %s220 = ssub.s32 %s21, 1
        %s221 = sand.u32 %s34, 1
        %s222 = scalar_lea.sflag [#allocation3], %s221
        %s223 = sand.u32 %s34, 1
        %s224 = smul.addr %s223, 64
        %s225 = scalar_lea.vmem [#allocation2], %s224
        // Predicated region
        $region33: #{tpu_custom_call.1} parent=31 // pred_check
          %p226 = pneg %p47
        $region34: #{tpu_custom_call.1} parent=31 // pred_check_branch
          %228 = sbr.rel (%p226) target = $region36
        $region35: #{tpu_custom_call.1} parent=31 // pred_region
          %229 = dma.done %s222, 1024
        $region36: #{tpu_custom_call.1} parent=31 // pred_fallthru
          _
        %s230 = sand.u32 %s34, 1
        %s231 = scalar_lea.sflag [#allocation3], %s230
        %s232 = sand.u32 %s34, 1
        %s233 = smul.addr %s232, 64
        %s234 = scalar_lea.vmem [#allocation2], %s233
        %p235 = pneg %p47
        %p236 = pneg %p44
        %p237 = pneg %p68
        %p238 = pneg %p65
        %p239 = pneg %p89
        %p240 = pneg %p86
        %p241 = pneg %p115
        %p242 = pneg %p112
        %s243 = sand.u32 %s102, 1
        %s244 = scalar_lea.sflag [#allocation4], %s243
        %s245 = sand.u32 %s102, 1
        %s246 = smul.addr %s245, 2
        %s247 = scalar_lea.vmem [#allocation5], %s246
        %p248 = pneg %p141
        %p249 = pneg %p138
        %s250 = sand.u32 %s26, 1
        %s251 = scalar_lea.sflag [#allocation7], %s250
        %s252 = sand.u32 %s128, 1
        %s253 = smul.addr %s252, 16
        %s254 = scalar_lea.vmem [#allocation6], %s253
        %p255 = pneg %p167
        %p256 = pneg %p164
        %s257 = sand.u32 %s26, 1
        %s258 = scalar_lea.sflag [#allocation7], %s257
        %s259 = sand.u32 %s154, 1
        %s260 = smul.addr %s259, 16
        %s261 = scalar_lea.vmem [#allocation8], %s260
        %s262 = smul.u32 2, %s26
        %s263 = smul.u32 2, %s26
        %s264 = smul.u32 2, %s26
        %v265 = vld [vmem:[%s225] sm:$0xff]
        %v266 = vld [vmem:[%s225 + $0x8] sm:$0xff]
        %v267 = vld [vmem:[%s225 + $0x10] sm:$0xff]
        %v268 = vld [vmem:[%s225 + $0x18] sm:$0xff]
        %v269 = vld [vmem:[%s225 + $0x20] sm:$0xff]
        %v270 = vld [vmem:[%s225 + $0x28] sm:$0xff]
        %v271 = vld [vmem:[%s225 + $0x30] sm:$0xff]
        %v272 = vld [vmem:[%s225 + $0x38] sm:$0xff]
        %v273 = vld [vmem:[%s1] sm:$0xff]
        %v274 = vld [vmem:[%s1 + $0x8] sm:$0xff]
        %v275 = vld [vmem:[%s2] sm:$0xff]
        %v276 = vld [vmem:[%s2 + $0x8] sm:$0xff]
        %278 = vset.pattern.permute.xlu0 0
        %279 = vperm.xlu0 %278, %v275
        %v280 = vpop.permute.xlu0 %279
        %283 = vset.pattern.permute.xlu0 0
        %284 = vperm.xlu0 %283, %v276
        %v285 = vpop.permute.xlu0 %284
        %vm287 = vcmask 261120
        %v289 = vsel %vm287, %v273, 0
        %v292 = vsel %vm287, %v274, 0
        %294 = vmatprep.subr.mxu0 0.0
        %295 = vmatpush1.msra.mxu0 0.0
        %296 = vmatprep.subr.mxu0 0.0
        %297 = vmatpush1.msra.mxu0 0.0
        %298 = vmatprep.subr.mxu0 0.0
        %299 = vmatpush1.msra.mxu0 0.0
        %300 = vmatprep.subr.mxu0 0.0
        %301 = vmatpush1.msra.mxu0 0.0
        %302 = vmatprep.subr.mxu0 0.0
        %303 = vmatpush1.msra.mxu0 0.0
        %304 = vmatprep.subr.mxu0 0.0
        %305 = vmatpush1.msra.mxu0 0.0
        %306 = vmatprep.subr.mxu0 0.0
        %307 = vmatpush1.msra.mxu0 0.0
        %308 = vmatprep.subr.mxu0 0.0
        %309 = vmatpush1.msra.mxu0 0.0
        %310 = vmatprep.subr.mxu0 0.0
        %311 = vmatpush1.msra.mxu0 0.0
        %312 = vmatprep.subr.mxu0 0.0
        %313 = vmatpush1.msra.mxu0 0.0
        %314 = vmatprep.subr.mxu0 0.0
        %315 = vmatpush1.msra.mxu0 0.0
        %316 = vmatprep.subr.mxu0 0.0
        %317 = vmatpush1.msra.mxu0 0.0
        %318 = vmatprep.subr.mxu0 0.0
        %319 = vmatpush1.msra.mxu0 %v268
        %320 = vmatprep.subr.mxu0 0.0
        %321 = vmatpush1.msra.mxu0 %v267
        %322 = vmatprep.subr.mxu0 0.0
        %323 = vmatpush1.msra.mxu0 %v266
        %324 = vmatprep.subr.mxu0 0.0
        %325 = vmatpush1.msra.mxu0 %v265
        %326 = vmatprep.subr.mxu0 0.0
        %327 = vmatpush2.msra.mxu0 0.0
        %328 = vmatprep.subr.mxu0 0.0
        %329 = vmatpush2.msra.mxu0 0.0
        %330 = vmatprep.subr.mxu0 0.0
        %331 = vmatpush2.msra.mxu0 0.0
        %332 = vmatprep.subr.mxu0 0.0
        %333 = vmatpush2.msra.mxu0 0.0
        %334 = vmatprep.subr.mxu0 0.0
        %335 = vmatpush2.msra.mxu0 0.0
        %336 = vmatprep.subr.mxu0 0.0
        %337 = vmatpush2.msra.mxu0 0.0
        %338 = vmatprep.subr.mxu0 0.0
        %339 = vmatpush2.msra.mxu0 0.0
        %340 = vmatprep.subr.mxu0 0.0
        %341 = vmatpush2.msra.mxu0 0.0
        %342 = vmatprep.subr.mxu0 0.0
        %343 = vmatpush2.msra.mxu0 0.0
        %344 = vmatprep.subr.mxu0 0.0
        %345 = vmatpush2.msra.mxu0 0.0
        %346 = vmatprep.subr.mxu0 0.0
        %347 = vmatpush2.msra.mxu0 0.0
        %348 = vmatprep.subr.mxu0 0.0
        %349 = vmatpush2.msra.mxu0 0.0
        %350 = vmatprep.subr.mxu0 0.0
        %351 = vmatpush2.msra.mxu0 0.0
        %352 = vmatprep.subr.mxu0 0.0
        %353 = vmatpush2.msra.mxu0 0.0
        %354 = vmatprep.subr.mxu0 0.0
        %355 = vmatpush2.msra.mxu0 0.0
        %356 = vmatprep.subr.mxu0 0.0
        %357 = vmatpush2.msra.mxu0 0.0
        %358 = vmatprep.mubr.f32.mxu0 0.0
        %359 = vmatmul.mubr.f32.gmra.mxu0 %v289
        %v360 = vpop.f32.mrf.mxu0
        %v361 = vadd.f32 %v280, %v360
        %v362 = vpop.f32.mrf.mxu0
        %363 = vmatprep.mubr.f32.mxu0 0.0
        %364 = vmatmul.mubr.f32.gmra.mxu0 %v292
        %v365 = vpop.f32.mrf.mxu0
        %v366 = vadd.f32 %v285, %v365
        %v367 = vpop.f32.mrf.mxu0
        %368 = vdwg.mxu0
        %369 = vmatprep.subr.mxu0 0.0
        %370 = vmatpush1.msra.mxu0 0.0
        %371 = vmatprep.subr.mxu0 0.0
        %372 = vmatpush1.msra.mxu0 0.0
        %373 = vmatprep.subr.mxu0 0.0
        %374 = vmatpush1.msra.mxu0 0.0
        %375 = vmatprep.subr.mxu0 0.0
        %376 = vmatpush1.msra.mxu0 0.0
        %377 = vmatprep.subr.mxu0 0.0
        %378 = vmatpush1.msra.mxu0 0.0
        %379 = vmatprep.subr.mxu0 0.0
        %380 = vmatpush1.msra.mxu0 0.0
        %381 = vmatprep.subr.mxu0 0.0
        %382 = vmatpush1.msra.mxu0 0.0
        %383 = vmatprep.subr.mxu0 0.0
        %384 = vmatpush1.msra.mxu0 0.0
        %385 = vmatprep.subr.mxu0 0.0
        %386 = vmatpush1.msra.mxu0 0.0
        %387 = vmatprep.subr.mxu0 0.0
        %388 = vmatpush1.msra.mxu0 0.0
        %389 = vmatprep.subr.mxu0 0.0
        %390 = vmatpush1.msra.mxu0 0.0
        %391 = vmatprep.subr.mxu0 0.0
        %392 = vmatpush1.msra.mxu0 0.0
        %393 = vmatprep.subr.mxu0 0.0
        %394 = vmatpush1.msra.mxu0 %v272
        %395 = vmatprep.subr.mxu0 0.0
        %396 = vmatpush1.msra.mxu0 %v271
        %397 = vmatprep.subr.mxu0 0.0
        %398 = vmatpush1.msra.mxu0 %v270
        %399 = vmatprep.subr.mxu0 0.0
        %400 = vmatpush1.msra.mxu0 %v269
        %401 = vmatprep.subr.mxu0 0.0
        %402 = vmatpush2.msra.mxu0 0.0
        %403 = vmatprep.subr.mxu0 0.0
        %404 = vmatpush2.msra.mxu0 0.0
        %405 = vmatprep.subr.mxu0 0.0
        %406 = vmatpush2.msra.mxu0 0.0
        %407 = vmatprep.subr.mxu0 0.0
        %408 = vmatpush2.msra.mxu0 0.0
        %409 = vmatprep.subr.mxu0 0.0
        %410 = vmatpush2.msra.mxu0 0.0
        %411 = vmatprep.subr.mxu0 0.0
        %412 = vmatpush2.msra.mxu0 0.0
        %413 = vmatprep.subr.mxu0 0.0
        %414 = vmatpush2.msra.mxu0 0.0
        %415 = vmatprep.subr.mxu0 0.0
        %416 = vmatpush2.msra.mxu0 0.0
        %417 = vmatprep.subr.mxu0 0.0
        %418 = vmatpush2.msra.mxu0 0.0
        %419 = vmatprep.subr.mxu0 0.0
        %420 = vmatpush2.msra.mxu0 0.0
        %421 = vmatprep.subr.mxu0 0.0
        %422 = vmatpush2.msra.mxu0 0.0
        %423 = vmatprep.subr.mxu0 0.0
        %424 = vmatpush2.msra.mxu0 0.0
        %425 = vmatprep.subr.mxu0 0.0
        %426 = vmatpush2.msra.mxu0 0.0
        %427 = vmatprep.subr.mxu0 0.0
        %428 = vmatpush2.msra.mxu0 0.0
        %429 = vmatprep.subr.mxu0 0.0
        %430 = vmatpush2.msra.mxu0 0.0
        %431 = vmatprep.subr.mxu0 0.0
        %432 = vmatpush2.msra.mxu0 0.0
        %433 = vmatprep.mubr.f32.mxu0 0.0
        %434 = vmatmul.mubr.f32.gmra.mxu0 %v289
        %v435 = vpop.f32.mrf.mxu0
        %v436 = vadd.f32 %v280, %v435
        %v437 = vpop.f32.mrf.mxu0
        %438 = vmatprep.mubr.f32.mxu0 0.0
        %439 = vmatmul.mubr.f32.gmra.mxu0 %v292
        %v440 = vpop.f32.mrf.mxu0
        %v441 = vadd.f32 %v285, %v440
        %v442 = vpop.f32.mrf.mxu0
        %443 = vdwg.mxu0
        %v444 = vmax.f32 %v361, -10.0
        %v445 = vmax.f32 %v436, -10.0
        %v446 = vmin.f32 %v444, 10.0
        %v447 = vmin.f32 %v445, 10.0
        %v448 = vlaneseq
        %v449 = vand.u32 %v448, 127
        %vm450 = vcmp.lt.s32.totalorder %v449, 16
        %v451 = vsel %vm450, 1, 0
        %vm452 = vcmp.eq.s32.totalorder %v451, 1
        %v453 = vsel %vm452, %v446, -1e+30
        %v454 = vsel %vm452, %v447, -1e+30
        %455 = vmax.xlane.f32.xlu0 %v453
        %v456 = vpop.xlane.xlu0 %455
        %457 = vmax.xlane.f32.xlu0 %v454
        %v458 = vpop.xlane.xlu0 %457
        %v459 = vsub.f32 %v453, %v456
        %v460 = vsub.f32 %v454, %v458
        %v461 = vmul.f32 %v459, 1.442695
        %v462 = vpow.pop %v461
        %v463 = vmul.f32 %v460, 1.442695
        %v464 = vpow.pop %v463
        %465 = vadd.xlane.f32.xlu0 %v462
        %v466 = vpop.xlane.xlu0 %465
        %467 = vadd.xlane.f32.xlu0 %v464
        %v468 = vpop.xlane.xlu0 %467
        %v469 = vrcp.pop %v466
        %v470 = vrcp.pop %v468
        %v471 = vmul.f32 %v466, %v469
        %v472 = vmul.f32 %v468, %v470
        %v473 = vsub.f32 2.0, %v471
        %v474 = vsub.f32 2.0, %v472
        %v475 = vmul.f32 %v469, %v473
        %v476 = vmul.f32 %v470, %v474
        %v477 = vmul.f32 %v462, %v475
        %v478 = vmul.f32 %v464, %v476
        %v479 = vxor.u32 %v366, 2147483648
        %v480 = vxor.u32 %v441, 2147483648
        %v481 = vmul.f32 %v479, 1.442695
        %v482 = vpow.pop %v481
        %v483 = vmul.f32 %v480, 1.442695
        %v484 = vpow.pop %v483
        %v485 = vadd.f32 %v482, 1.0
        %v486 = vadd.f32 %v484, 1.0
        %v487 = vrcp.pop %v485
        %v488 = vmul.f32 1.0, %v487
        %v489 = vrcp.pop %v486
        %v490 = vmul.f32 1.0, %v489
        %v491 = vmul.f32 %v477, %v488
        %v492 = vmul.f32 %v478, %v490
        %493 = vadd.xlane.f32.xlu0 %v491
        %v494 = vpop.xlane.xlu0 %493
        %495 = vadd.xlane.f32.xlu0 %v492
        %v496 = vpop.xlane.xlu0 %495
        %v499 = vlaneseq
        %v500 = vshrl.u32 %v499, 7
        %v501 = vsub.s32 %v449, %v500
        %v502 = vrot.slane %v494, %v501
        %v503 = vlaneseq
        %v504 = vshrl.u32 %v503, 7
        %v505 = vsub.s32 %v449, %v504
        %v506 = vrot.slane %v496, %v505
        %vm507 = vcmask 1041409
        %v508 = vsel %vm507, %v506, %v502
        %vm510 = vcmask 58368
        %511 = vst.msk [vmem:[%s247] sm:$0x3] %vm510, %v508
        %512 = vst [vmem:[%s254] sm:$0xff] %v477
        %513 = vst [vmem:[%s254 + $0x8] sm:$0xff] %v478
        %514 = vst [vmem:[%s261] sm:$0xff] %v488
        %515 = vst [vmem:[%s261 + $0x8] sm:$0xff] %v490
        %s516 = sand.u32 %s102, 1
        %s517 = scalar_lea.sflag [#allocation4], %s516
        %s518 = sand.u32 %s102, 1
        %s519 = smul.addr %s518, 2
        %s520 = scalar_lea.vmem [#allocation5], %s519
        %s521 = sand.u32 %s26, 1
        %s522 = scalar_lea.sflag [#allocation7], %s521
        %s523 = sand.u32 %s128, 1
        %s524 = smul.addr %s523, 16
        %s525 = scalar_lea.vmem [#allocation6], %s524
        %s526 = sand.u32 %s26, 1
        %s527 = scalar_lea.sflag [#allocation7], %s526
        %s528 = sand.u32 %s154, 1
        %s529 = smul.addr %s528, 16
        %s530 = scalar_lea.vmem [#allocation8], %s529
        // Predicated region
        $region37: #{tpu_custom_call.1} parent=31 // pred_check
          %p531 = pneg %p112
        $region38: #{tpu_custom_call.1} parent=31 // pred_check_branch
          %533 = sbr.rel (%p531) target = $region40
        $region39: #{tpu_custom_call.1} parent=31 // pred_region
          %s535 = ssub.s32 32, 32
          %536 = vsyncadd %s517, %s535
          %s537 = smul.addr %s26, 32
          %s538 = scalar_lea.hbm %s3, %s537
          %s540 = sshll.u32 %s520, 4
          %s541 = int_to_ptr.vmem [resolvable:$true] %s540
          %543 = dma.vmem_to_hbm [thread:$0]  %s541, 32, %s538, %s517
        $region40: #{tpu_custom_call.1} parent=31 // pred_fallthru
          _
        // Predicated region
        $region41: #{tpu_custom_call.1} parent=31 // pred_check
          %p544 = pneg %p138
        $region42: #{tpu_custom_call.1} parent=31 // pred_check_branch
          %546 = sbr.rel (%p544) target = $region44
        $region43: #{tpu_custom_call.1} parent=31 // pred_region
          %s547 = smul.u32 2, %s26
          %s549 = ssub.s32 256, 256
          %550 = vsyncadd %s522, %s549
          %s551 = smul.addr %s547, 128
          %s552 = scalar_lea.hbm %s4, %s551
          %s553 = sshll.u32 %s525, 4
          %s554 = int_to_ptr.vmem [resolvable:$true] %s553
          %559 = dma.vmem_to_hbm [thread:$0]  %s554, 256, %s552, %s522, 128, 128, 8
        $region44: #{tpu_custom_call.1} parent=31 // pred_fallthru
          _
        // Predicated region
        $region45: #{tpu_custom_call.1} parent=31 // pred_check
          %p560 = pneg %p164
        $region46: #{tpu_custom_call.1} parent=31 // pred_check_branch
          %562 = sbr.rel (%p560) target = $region48
        $region47: #{tpu_custom_call.1} parent=31 // pred_region
          %s563 = smul.u32 2, %s26
          %s565 = ssub.s32 256, 256
          %566 = vsyncadd %s527, %s565
          %s567 = smul.addr %s563, 128
          %s568 = scalar_lea.hbm %s5, %s567
          %s569 = sshll.u32 %s530, 4
          %s570 = int_to_ptr.vmem [resolvable:$true] %s569
          %575 = dma.vmem_to_hbm [thread:$0]  %s570, 256, %s568, %s527, 128, 128, 8
        $region48: #{tpu_custom_call.1} parent=31 // pred_fallthru
          _
      $region32: #{tpu_custom_call.1} parent=5 // pred_fallthru
        _
      %p576 = scmp.le.s32.totalorder 2, %s21
      // Predicated region
      $region49: #{tpu_custom_call.1} parent=5 // pred_check
        %p577 = pneg %p576
      $region50: #{tpu_custom_call.1} parent=5 // pred_check_branch
        %579 = sbr.rel (%p577) target = $region52
      $region51: #{tpu_custom_call.1} parent=5 // pred_region
        %s580 = ssub.s32 %s21, 2
        // Predicated region
        $region53: #{tpu_custom_call.1} parent=51 // pred_check
          %p581 = pneg %p118
        $region54: #{tpu_custom_call.1} parent=51 // pred_check_branch
          %583 = sbr.rel (%p581) target = $region56
        $region55: #{tpu_custom_call.1} parent=51 // pred_region
          %s584 = sand.u32 %s103, 1
          %s585 = scalar_lea.sflag [#allocation4], %s584
          %s586 = sand.u32 %s103, 1
          %s587 = smul.addr %s586, 2
          %s588 = scalar_lea.vmem [#allocation5], %s587
          %589 = dma.done %s585, 32
        $region56: #{tpu_custom_call.1} parent=51 // pred_fallthru
          _
        // Predicated region
        $region57: #{tpu_custom_call.1} parent=51 // pred_check
          %p590 = pneg %p144
        $region58: #{tpu_custom_call.1} parent=51 // pred_check_branch
          %592 = sbr.rel (%p590) target = $region60
        $region59: #{tpu_custom_call.1} parent=51 // pred_region
          %s593 = sand.u32 %s27, 1
          %s594 = scalar_lea.sflag [#allocation7], %s593
          %s595 = sand.u32 %s129, 1
          %s596 = smul.addr %s595, 16
          %s597 = scalar_lea.vmem [#allocation6], %s596
          %598 = dma.done %s594, 256
        $region60: #{tpu_custom_call.1} parent=51 // pred_fallthru
          _
        // Predicated region
        $region61: #{tpu_custom_call.1} parent=51 // pred_check
          %p599 = pneg %p170
        $region62: #{tpu_custom_call.1} parent=51 // pred_check_branch
          %601 = sbr.rel (%p599) target = $region64
        $region63: #{tpu_custom_call.1} parent=51 // pred_region
          %s602 = sand.u32 %s27, 1
          %s603 = scalar_lea.sflag [#allocation7], %s602
          %s604 = sand.u32 %s155, 1
          %s605 = smul.addr %s604, 16
          %s606 = scalar_lea.vmem [#allocation8], %s605
          %607 = dma.done %s603, 256
        $region64: #{tpu_custom_call.1} parent=51 // pred_fallthru
          _
      $region52: #{tpu_custom_call.1} parent=5 // pred_fallthru
        _
    $region6: #{tpu_custom_call.1} parent=1 // loop_footer
      %s25 = sadd.s32 1, %s21
    $region7: #{tpu_custom_call.1} parent=1 // loop_footer_branch
      %20 = sbr.rel target = $region3
    $region8: #{tpu_custom_call.1} parent=1 // loop_exit
      _
    %608 = vsyncpa [#allocation3], 1
    %s609 = scalar_lea.sflag [#allocation3], 1
    %610 = vsyncpa %s609, 1
    %611 = vsyncpa [#allocation4], 1
    %s612 = scalar_lea.sflag [#allocation4], 1
    %613 = vsyncpa %s612, 1
    %614 = vsyncpa [#allocation7], 1
    %s615 = scalar_lea.sflag [#allocation7], 1
    %616 = vsyncpa %s615, 1

</llo_original>
